<compile_context>
chip_gen: v6e
topology: v6e:2x2x1
jax: 0.10.0
libtpu: 0.0.40
codegen_flags: <defaults>
</compile_context>

<pallas_src>
import jax
import jax.numpy as jnp
from jax import lax
from jax.experimental import pallas as pl
from jax.experimental.pallas import tpu as pltpu

LANE = 128


# ----------------------------------------------------------------------------
# One fused kernel: (conv -> ReLU -> pool) x N -> flatten -> FC
# ----------------------------------------------------------------------------
def _build_fused_kernel(pool_descs):
    """pool_descs[i] says how conv layer i's pooling is realized inside the kernel:
         ('none',)       -- nothing in-kernel (no pooling, or avg/decimation folded offline)
         ('rollmax', k)  -- window max via k-1 lane-rolls + VPU max; decimation folded offline
         ('decim', k)    -- fallback: elementwise max over k 0/1 decimation matmuls
    """

    def kernel(*refs):
        out_ref = refs[-1]
        in_refs = refs[:-1]
        h = in_refs[0][...]                                   # (bt, C_in*L) activation slab
        idx = 1
        for desc in pool_descs:
            m_ref, b_ref = in_refs[idx], in_refs[idx + 1]
            idx += 2
            # Conv1d as one banded-matrix matmul (MXU), bias + ReLU in f32 on the VPU.
            a = jnp.dot(h.astype(m_ref.dtype), m_ref[...],
                        preferred_element_type=jnp.float32) + b_ref[...]
            a = jnp.maximum(a, 0.0)
            kind = desc[0]
            if kind == 'rollmax':
                # Non-overlapping max pool: running max over left-rolls (XLU/VPU, off the MXU).
                # Non-selected lanes hold cross-window garbage, but the q=0 decimation folded
                # into the NEXT matmul operand multiplies them by zero rows.
                width = a.shape[-1]
                m = a
                for q in range(1, desc[1]):
                    m = jnp.maximum(m, pltpu.roll(a, shift=width - q, axis=1))
                a = m
            elif kind == 'decim':
                # General (overlapping) max-pool fallback: max over k decimation matmuls.
                p_ref = in_refs[idx]
                idx += 1
                ac = a.astype(p_ref.dtype)
                pooled = jnp.dot(ac, p_ref[0], preferred_element_type=jnp.float32)
                for q in range(1, desc[1]):
                    pooled = jnp.maximum(
                        pooled, jnp.dot(ac, p_ref[q], preferred_element_type=jnp.float32))
                a = pooled
            h = a
        fcw_ref, fcb_ref = in_refs[idx], in_refs[idx + 1]
        # Flatten is a no-op in this layout (feature index = c*L + l == torch .view(B,-1)).
        # FC weights/bias are zero-padded to 128 lanes -> unmasked lane-dense store.
        out_ref[...] = (jnp.dot(h.astype(fcw_ref.dtype), fcw_ref[...],
                                preferred_element_type=jnp.float32)
                        + fcb_ref[...]).astype(out_ref.dtype)

    return kernel


def simple_cnn_forward(packed, x, *, batch_tile=128):
    """x: (B, C_in, L) float32. Returns (B, num_classes) float32."""
    ops, pool_descs, meta = packed
    compute_dtype = meta["compute_dtype"]
    out_width = meta["out_width"]
    num_classes = meta["num_classes"]

    B = x.shape[0]
    x_flat = x.reshape(B, -1).astype(compute_dtype)           # only XLA glue in the forward pass

    # Batch tiling: one block when small; else 128-row tiles (full M tile for the v5e 128x128 MXU,
    # half the vreg pressure of 256-row tiles) with a zero-padded tail block.
    if B <= batch_tile:
        bt, Bp = B, B
    else:
        bt = batch_tile
        Bp = -(-B // bt) * bt
        if Bp != B:
            x_flat = jnp.pad(x_flat, ((0, Bp - B), (0, 0)))
    grid = (Bp // bt,)

    kernel = _build_fused_kernel(pool_descs)

    in_specs = [pl.BlockSpec((bt, x_flat.shape[1]), lambda i: (i, 0))]
    for op in ops:                                            # weights: same block every step
        if op.ndim == 2:
            in_specs.append(pl.BlockSpec(op.shape, lambda i: (0, 0)))
        else:
            in_specs.append(pl.BlockSpec(op.shape, lambda i: (0, 0, 0)))

    # Cost estimate + explicit VMEM budget (all weight blocks are grid-invariant but
    # double-buffered by default; leave generous headroom, stay well under v7x's 64 MiB).
    op_bytes = sum(int(o.size) * o.dtype.itemsize for o in ops)
    in_bytes = int(x_flat.size) * x_flat.dtype.itemsize
    out_bytes = Bp * out_width * 4
    cost = pl.CostEstimate(flops=int(meta["flops_per_row"]) * Bp,
                           transcendentals=0,
                           bytes_accessed=in_bytes + op_bytes + out_bytes)
    block_bytes = bt * x_flat.shape[1] * x_flat.dtype.itemsize + bt * out_width * 4
    vmem_limit = int(min(max(4 * (op_bytes + block_bytes) + (4 << 20), 16 << 20), 48 << 20))

    out = pl.pallas_call(
        kernel,
        out_shape=jax.ShapeDtypeStruct((Bp, out_width), jnp.float32),
        grid=grid,
        in_specs=in_specs,
        out_specs=pl.BlockSpec((bt, out_width), lambda i: (i, 0)),
        compiler_params=pltpu.CompilerParams(
            # "parallel" lets v7x's two TensorCores split the batch blocks; keep "arbitrary"
            # for the single-block latency-bound case.
            dimension_semantics=("parallel",) if grid[0] > 1 else ("arbitrary",),
            vmem_limit_bytes=vmem_limit),
        cost_estimate=cost,
    )(x_flat, *ops)

    return out[:B, :num_classes]


# ----------------------------------------------------------------------------
# One-time parameter re-layout (conv -> banded matrix, pooling folded offline, fc transpose+pad)
# ----------------------------------------------------------------------------
def _conv_as_matrix(w, L, stride, pad):
    """Fold Conv1d(weight=w, stride, zero-pad) over length L into a (C_in*L, C_out*Lo) matrix so
    that out_flat = x.reshape(B, C_in*L) @ M reproduces the conv in (c-major, l-minor) layout."""
    C_out, C_in, K = w.shape
    Lo = (L + 2 * pad - K) // stride + 1
    i = jnp.arange(L)                                         # input position
    l = jnp.arange(Lo)                                        # output position
    k = i[:, None] + pad - l[None, :] * stride                # tap index, shape (L, Lo)
    valid = (k >= 0) & (k < K)
    k_safe = jnp.clip(k, 0, K - 1)
    w_cik = jnp.transpose(w, (1, 0, 2))                       # (C_in, C_out, K)
    M = jnp.where(valid[None, None], w_cik[:, :, k_safe], 0.0)  # (C_in, C_out, L, Lo)
    M = jnp.transpose(M, (0, 2, 1, 3)).reshape(C_in * L, C_out * Lo)
    return M, Lo


def _decimation_matrices(C, Lo, pool_k, pool_s):
    """0/1 matrices P_q of shape (pool_k, C*Lo, C*Lp) with
    (act @ P_q)[b, c*Lp + p] = act[b, c*Lo + p*pool_s + q]."""
    Lp = (Lo - pool_k) // pool_s + 1
    eye_c = jnp.eye(C, dtype=jnp.float32)
    mats = []
    for q in range(pool_k):
        sel = (jnp.arange(Lo)[:, None]
               == (jnp.arange(Lp)[None, :] * pool_s + q)).astype(jnp.float32)   # (Lo, Lp)
        mats.append(jnp.einsum('ab,ij->aibj', eye_c, sel).reshape(C * Lo, C * Lp))
    return jnp.stack(mats), Lp


def pack_params(params, *, sequence_length, kernel_sizes=(3, 3), strides=(1, 1), pads=(1, 1),
                pool_types=('max', 'max'), pool_ks=(2, 2), pool_ss=(2, 2),
                compute_dtype=jnp.bfloat16):
    """One-time re-layout of PyTorch-style parameters into fused-kernel operands."""
    ops = []
    pool_descs = []
    matmul_dims = []
    L = sequence_length
    pending = None            # selection/average matrix to fold into the NEXT matmul operand
    for i, (w, b) in enumerate(params["conv"]):
        M, Lo = _conv_as_matrix(w, L, strides[i], pads[i])
        if pending is not None:
            M = pending @ M                                   # fold previous pool's decimation
            pending = None
        ops.append(M.astype(compute_dtype))
        matmul_dims.append(M.shape)
        ops.append(jnp.repeat(b, Lo)[None, :].astype(jnp.float32))   # bias pre-broadcast, f32
        C_out = w.shape[0]
        pt = (pool_types[i] or 'none').lower()
        if pt == 'none':
            pool_descs.append(('none',))
            L = Lo
        else:
            P, Lp = _decimation_matrices(C_out, Lo, pool_ks[i], pool_ss[i])
            if pt == 'avg':
                pending = P.mean(axis=0)                      # AvgPool is linear: fully offline
                pool_descs.append(('none',))
            elif pool_ks[i] == pool_ss[i]:
                pending = P[0]                                # fold q=0 decimation offline
                pool_descs.append(('rollmax', int(pool_ks[i])))
            else:
                ops.append(P.astype(compute_dtype))           # overlapping max-pool fallback
                matmul_dims += [tuple(P.shape[1:])] * int(P.shape[0])
                pool_descs.append(('decim', int(P.shape[0])))
            L = Lp
    fc_w = jnp.transpose(params["fc_w"]).astype(jnp.float32)  # (F, num_classes)
    fc_b = params["fc_b"].astype(jnp.float32)
    if pending is not None:
        fc_w = pending @ fc_w
        pending = None
    num_classes = fc_w.shape[1]
    out_width = max(LANE, -(-num_classes // LANE) * LANE)     # lane-dense output (multiple of 128)
    fc_w_pad = jnp.zeros((fc_w.shape[0], out_width), jnp.float32).at[:, :num_classes].set(fc_w)
    fc_b_pad = jnp.zeros((1, out_width), jnp.float32).at[:, :num_classes].set(fc_b[None, :])
    ops.append(fc_w_pad.astype(compute_dtype))
    matmul_dims.append(fc_w_pad.shape)
    ops.append(fc_b_pad)
    meta = dict(compute_dtype=compute_dtype,
                num_classes=int(num_classes),
                out_width=int(out_width),
                flops_per_row=2 * sum(int(kd) * int(nd) for kd, nd in matmul_dims))
    return tuple(ops), tuple(pool_descs), meta


# ----------------------------------------------------------------------------
# Deterministic parameter construction (PyTorch layout, used by both kernel and reference)
# ----------------------------------------------------------------------------
def init_params(key, input_channels, num_classes, sequence_length,
                filters=(16, 32), kernel_sizes=(3, 3), strides=(1, 1), pads=(1, 1),
                pool_ks=(2, 2), pool_ss=(2, 2)):
    params = {"conv": []}
    c_in = input_channels
    L = sequence_length
    for i, c_out in enumerate(filters):
        key, kw, kb = jax.random.split(key, 3)
        fan_in = c_in * kernel_sizes[i]
        bound = 1.0 / jnp.sqrt(fan_in)
        w = jax.random.uniform(kw, (c_out, c_in, kernel_sizes[i]), jnp.float32, -bound, bound)
        b = jax.random.uniform(kb, (c_out,), jnp.float32, -bound, bound)
        params["conv"].append((w, b))
        L_out = (L + 2 * pads[i] - kernel_sizes[i]) // strides[i] + 1
        L = (L_out - pool_ks[i]) // pool_ss[i] + 1
        c_in = c_out
    fc_in = c_in * L
    key, kw, kb = jax.random.split(key, 3)
    bound = 1.0 / jnp.sqrt(fc_in)
    params["fc_w"] = jax.random.uniform(kw, (num_classes, fc_in), jnp.float32, -bound, bound)
    params["fc_b"] = jax.random.uniform(kb, (num_classes,), jnp.float32, -bound, bound)
    return params


# ----------------------------------------------------------------------------
# Pure-JAX reference (for correctness verification)
# ----------------------------------------------------------------------------
def reference_forward(params, x, kernel_sizes=(3, 3), strides=(1, 1), pads=(1, 1),
                      pool_ks=(2, 2), pool_ss=(2, 2)):
    for i, (w, b) in enumerate(params["conv"]):
        y = lax.conv_general_dilated(
            x, w, window_strides=(strides[i],), padding=[(pads[i], pads[i])],
            dimension_numbers=("NCH", "OIH", "NCH"))
        y = y + b[None, :, None]
        y = jnp.maximum(y, 0.0)
        B, C, L = y.shape
        Lp = (L - pool_ks[i]) // pool_ss[i] + 1
        # pool_k == pool_s for the default config
        y = jnp.max(y[:, :, :Lp * pool_ss[i]].reshape(B, C, Lp, pool_ks[i]), axis=-1)
        x = y
    x = x.reshape(x.shape[0], -1)
    return x @ params["fc_w"].T + params["fc_b"][None, :]


if __name__ == "__main__":
    B, C_in, L, num_classes = 2, 4, 16, 8
    key = jax.random.PRNGKey(0)
    key, kx = jax.random.split(key)
    x = jax.random.normal(kx, (B, C_in, L), jnp.float32)

    params = init_params(key, C_in, num_classes, L)
    ref = reference_forward(params, x)

    # 1) f32 operands: bit-compatible with the reference (validates roll-max pooling, offline
    #    decimation folding, lane-padded FC output).
    packed_f32 = pack_params(params, sequence_length=L, compute_dtype=jnp.float32)
    out_f32 = jax.block_until_ready(jax.jit(lambda xb: simple_cnn_forward(packed_f32, xb))(x))
    assert out_f32.shape == (B, num_classes), out_f32.shape
    assert jnp.allclose(out_f32, ref, rtol=1e-4, atol=1e-4), (out_f32, ref)

    # 2) bf16 operands (perf default for the bf16-native v6e/v7x MXUs), f32 accumulation.
    packed_bf16 = pack_params(params, sequence_length=L, compute_dtype=jnp.bfloat16)
    out_bf16 = jax.block_until_ready(jax.jit(lambda xb: simple_cnn_forward(packed_bf16, xb))(x))
    assert out_bf16.shape == (B, num_classes), out_bf16.shape
    assert jnp.allclose(out_bf16, ref, rtol=5e-2, atol=5e-2), (out_bf16, ref)

    print("KERNEL_OK")
</pallas_src>

<mosaic_0001>
module attributes {stable_mosaic.version = 11 : i64} {
  func.func @kernel(%arg0: i32, %arg1: memref<2x64xf32, #tpu.memory_space<vmem>>, %arg2: memref<64x256xf32, #tpu.memory_space<vmem>>, %arg3: memref<1x256xf32, #tpu.memory_space<vmem>>, %arg4: memref<256x256xf32, #tpu.memory_space<vmem>>, %arg5: memref<1x256xf32, #tpu.memory_space<vmem>>, %arg6: memref<256x128xf32, #tpu.memory_space<vmem>>, %arg7: memref<1x128xf32, #tpu.memory_space<vmem>>, %arg8: memref<2x128xf32, #tpu.memory_space<vmem>>) attributes {dimension_semantics = [#tpu.dimension_semantics<arbitrary>], iteration_bounds = array<i64: 1>, scalar_prefetch = 0 : i64, scratch_operands = 0 : i64, tpu.core_type = #tpu.core_type<tc>, window_params = [{transform_indices = @transform_0, window_bounds = array<i64: 2, 64>}, {pipeline_mode = #tpu.pipeline_mode<synchronous>, transform_indices = @transform_1, window_bounds = array<i64: 64, 256>}, {pipeline_mode = #tpu.pipeline_mode<synchronous>, transform_indices = @transform_2, window_bounds = array<i64: 1, 256>}, {pipeline_mode = #tpu.pipeline_mode<synchronous>, transform_indices = @transform_3, window_bounds = array<i64: 256, 256>}, {pipeline_mode = #tpu.pipeline_mode<synchronous>, transform_indices = @transform_4, window_bounds = array<i64: 1, 256>}, {pipeline_mode = #tpu.pipeline_mode<synchronous>, transform_indices = @transform_5, window_bounds = array<i64: 256, 128>}, {pipeline_mode = #tpu.pipeline_mode<synchronous>, transform_indices = @transform_6, window_bounds = array<i64: 1, 128>}, {transform_indices = @transform_7, window_bounds = array<i64: 2, 128>}]} {
    %c0 = arith.constant 0 : index
    %c0_0 = arith.constant 0 : index
    %0 = vector.load %arg1[%c0, %c0_0] : memref<2x64xf32, #tpu.memory_space<vmem>>, vector<2x64xf32>
    %c0_1 = arith.constant 0 : index
    %c0_2 = arith.constant 0 : index
    %1 = vector.load %arg2[%c0_1, %c0_2] : memref<64x256xf32, #tpu.memory_space<vmem>>, vector<64x256xf32>
    %cst = arith.constant dense<0.000000e+00> : vector<2x256xf32>
    %2 = tpu.matmul %0, %1, %cst {dimension_numbers = #tpu.dot_dimension_numbers<[1], [0], [0], [1], [0, 0, 1, 1], [], []>} : vector<2x64xf32>, vector<64x256xf32>, vector<2x256xf32> -> vector<2x256xf32>
    %c0_3 = arith.constant 0 : index
    %c0_4 = arith.constant 0 : index
    %3 = vector.load %arg3[%c0_3, %c0_4] : memref<1x256xf32, #tpu.memory_space<vmem>>, vector<1x256xf32>
    %4 = vector.broadcast %3 : vector<1x256xf32> to vector<2x256xf32>
    %5 = arith.addf %2, %4 : vector<2x256xf32>
    %cst_5 = arith.constant 0.000000e+00 : f32
    %6 = vector.broadcast %cst_5 : f32 to vector<2x256xf32>
    %7 = arith.maximumf %5, %6 : vector<2x256xf32>
    %c255_i32 = arith.constant 255 : i32
    %8 = tpu.dynamic_rotate %7 by %c255_i32 dim 1 : vector<2x256xf32>, i32 -> vector<2x256xf32>
    %9 = arith.maximumf %7, %8 : vector<2x256xf32>
    %c0_6 = arith.constant 0 : index
    %c0_7 = arith.constant 0 : index
    %10 = vector.load %arg4[%c0_6, %c0_7] : memref<256x256xf32, #tpu.memory_space<vmem>>, vector<256x256xf32>
    %cst_8 = arith.constant dense<0.000000e+00> : vector<2x256xf32>
    %11 = tpu.matmul %9, %10, %cst_8 {dimension_numbers = #tpu.dot_dimension_numbers<[1], [0], [0], [1], [0, 0, 1, 1], [], []>} : vector<2x256xf32>, vector<256x256xf32>, vector<2x256xf32> -> vector<2x256xf32>
    %c0_9 = arith.constant 0 : index
    %c0_10 = arith.constant 0 : index
    %12 = vector.load %arg5[%c0_9, %c0_10] : memref<1x256xf32, #tpu.memory_space<vmem>>, vector<1x256xf32>
    %13 = vector.broadcast %12 : vector<1x256xf32> to vector<2x256xf32>
    %14 = arith.addf %11, %13 : vector<2x256xf32>
    %cst_11 = arith.constant 0.000000e+00 : f32
    %15 = vector.broadcast %cst_11 : f32 to vector<2x256xf32>
    %16 = arith.maximumf %14, %15 : vector<2x256xf32>
    %c255_i32_12 = arith.constant 255 : i32
    %17 = tpu.dynamic_rotate %16 by %c255_i32_12 dim 1 : vector<2x256xf32>, i32 -> vector<2x256xf32>
    %18 = arith.maximumf %16, %17 : vector<2x256xf32>
    %c0_13 = arith.constant 0 : index
    %c0_14 = arith.constant 0 : index
    %19 = vector.load %arg6[%c0_13, %c0_14] : memref<256x128xf32, #tpu.memory_space<vmem>>, vector<256x128xf32>
    %cst_15 = arith.constant dense<0.000000e+00> : vector<2x128xf32>
    %20 = tpu.matmul %18, %19, %cst_15 {dimension_numbers = #tpu.dot_dimension_numbers<[1], [0], [0], [1], [0, 0, 1, 1], [], []>} : vector<2x256xf32>, vector<256x128xf32>, vector<2x128xf32> -> vector<2x128xf32>
    %c0_16 = arith.constant 0 : index
    %c0_17 = arith.constant 0 : index
    %21 = vector.load %arg7[%c0_16, %c0_17] : memref<1x128xf32, #tpu.memory_space<vmem>>, vector<1x128xf32>
    %22 = vector.broadcast %21 : vector<1x128xf32> to vector<2x128xf32>
    %23 = arith.addf %20, %22 : vector<2x128xf32>
    %c0_18 = arith.constant 0 : index
    %c0_19 = arith.constant 0 : index
    %24 = vector.load %arg8[%c0_18, %c0_19] : memref<2x128xf32, #tpu.memory_space<vmem>>, vector<2x128xf32>
    tpu.vector_store %arg8[%c0_18, %c0_19], %23 {strides = array<i32>} : memref<2x128xf32, #tpu.memory_space<vmem>>, vector<2x128xf32>,
    return
  }
  func.func @transform_0(%arg0: i32) -> (i32, i32) {
    %c0_i32 = arith.constant 0 : i32
    %c0_i32_0 = arith.constant 0 : i32
    return %arg0, %c0_i32 : i32, i32
  }
  func.func @transform_1(%arg0: i32) -> (i32, i32) {
    %c0_i32 = arith.constant 0 : i32
    %c0_i32_0 = arith.constant 0 : i32
    %c0_i32_1 = arith.constant 0 : i32
    return %c0_i32, %c0_i32_0 : i32, i32
  }
  func.func @transform_2(%arg0: i32) -> (i32, i32) {
    %c0_i32 = arith.constant 0 : i32
    %c0_i32_0 = arith.constant 0 : i32
    %c0_i32_1 = arith.constant 0 : i32
    return %c0_i32, %c0_i32_0 : i32, i32
  }
  func.func @transform_3(%arg0: i32) -> (i32, i32) {
    %c0_i32 = arith.constant 0 : i32
    %c0_i32_0 = arith.constant 0 : i32
    %c0_i32_1 = arith.constant 0 : i32
    return %c0_i32, %c0_i32_0 : i32, i32
  }
  func.func @transform_4(%arg0: i32) -> (i32, i32) {
    %c0_i32 = arith.constant 0 : i32
    %c0_i32_0 = arith.constant 0 : i32
    %c0_i32_1 = arith.constant 0 : i32
    return %c0_i32, %c0_i32_0 : i32, i32
  }
  func.func @transform_5(%arg0: i32) -> (i32, i32) {
    %c0_i32 = arith.constant 0 : i32
    %c0_i32_0 = arith.constant 0 : i32
    %c0_i32_1 = arith.constant 0 : i32
    return %c0_i32, %c0_i32_0 : i32, i32
  }
  func.func @transform_6(%arg0: i32) -> (i32, i32) {
    %c0_i32 = arith.constant 0 : i32
    %c0_i32_0 = arith.constant 0 : i32
    %c0_i32_1 = arith.constant 0 : i32
    return %c0_i32, %c0_i32_0 : i32, i32
  }
  func.func @transform_7(%arg0: i32) -> (i32, i32) {
    %c0_i32 = arith.constant 0 : i32
    %c0_i32_0 = arith.constant 0 : i32
    return %arg0, %c0_i32 : i32, i32
  }
}

</mosaic_0001>

<llo_original>
// kernel: _lambda_.1
$region0: #{_lambda_.1}
  #allocation0 [shape = 'u32[]', space=smem, size = 0x4, offset = 0x4, fixed_abs, tag = 'smem constant byte address 0x4 - core index']
  #allocation1 [shape = 'u32[144,128]{1,0:T(1,128)}', space=vmem, size = 0x12000, scoped, tag = 'internal scratch']
  %s0 = inlined_call_operand.vmem [shape: f32[2,64], index: 0, kind: input, shape index: {}]
  %s1 = inlined_call_operand.hbm [shape: f32[64,256], index: 1, kind: input, shape index: {}]
  %s2 = inlined_call_operand.vmem [shape: f32[1,256], index: 2, kind: input, shape index: {}]
  %s3 = inlined_call_operand.hbm [shape: f32[256,256], index: 3, kind: input, shape index: {}]
  %s4 = inlined_call_operand.vmem [shape: f32[1,256], index: 4, kind: input, shape index: {}]
  %s5 = inlined_call_operand.hbm [shape: f32[256,128], index: 5, kind: input, shape index: {}]
  %s6 = inlined_call_operand.vmem [shape: f32[1,128], index: 6, kind: input, shape index: {}]
  %s7 = inlined_call_operand.hbm [shape: f32[2,128], index: 7, kind: output, shape index: {}]
  %s8 = sld [smem:[#allocation0]]
  $region50: #{_lambda_.1} parent=0
    _
  %s10 = ssub.s32 1, %s8
  %s11 = scalar_select 0, %s10, %s8
  $region1: #{_lambda_.1} parent=0
    #allocation2 [shape = 'u8[65536]{0}', space=vmem, size = 0x10000, scoped, tag = 'input window, operand 1, single buffered']
    #allocation3 [shape = 's32[1]{0}', space=sflag, size = 0x4, scoped, tag = 'scoped memory for _lambda_.1']
    #allocation4 [shape = 's32[1]{0}', space=sflag, size = 0x4, scoped, tag = 'scoped memory for _lambda_.1']
    #allocation5 [shape = 'u8[262144]{0}', space=vmem, size = 0x40000, scoped, tag = 'input window, operand 3, single buffered']
    #allocation6 [shape = 's32[1]{0}', space=sflag, size = 0x4, scoped, tag = 'scoped memory for _lambda_.1']
    #allocation7 [shape = 'u8[131072]{0}', space=vmem, size = 0x20000, scoped, tag = 'input window, operand 5, single buffered']
    #allocation8 [shape = 'u8[1024]{0}', space=vmem, size = 0x400, scoped, tag = 'output window, operand 0, single buffered']
    %12 = vsyncpa [#allocation3], 0
    %13 = vsyncpa [#allocation6], 0
    %14 = vsyncpa [#allocation4], 0
    // Predicated region
    $region2: #{_lambda_.1} parent=1 // pred_check
      _
    $region3: #{_lambda_.1} parent=1 // pred_check_branch
      %16 = sbr.rel (0) target = $region5
    $region4: #{_lambda_.1} parent=1 // pred_region
      _
    $region5: #{_lambda_.1} parent=1 // pred_fallthru
      _
    // Predicated region
    $region6: #{_lambda_.1} parent=1 // pred_check
      _
    $region7: #{_lambda_.1} parent=1 // pred_check_branch
      %18 = sbr.rel (0) target = $region9
    $region8: #{_lambda_.1} parent=1 // pred_region
      %s20 = ssub.s32 2048, 2048
      %21 = vsyncadd [#allocation3], %s20
      %s22 = sshll.u32 [#allocation2], 4
      %s23 = int_to_ptr.vmem [resolvable:$true] %s22
      %28 = dma.hbm_to_vmem [thread:$0]  %s1, 2048, %s23, [#allocation3], 256, 256, 16
    $region9: #{_lambda_.1} parent=1 // pred_fallthru
      _
    // Predicated region
    $region10: #{_lambda_.1} parent=1 // pred_check
      _
    $region11: #{_lambda_.1} parent=1 // pred_check_branch
      %30 = sbr.rel (0) target = $region13
    $region12: #{_lambda_.1} parent=1 // pred_region
      _
    $region13: #{_lambda_.1} parent=1 // pred_fallthru
      _
    // Predicated region
    $region14: #{_lambda_.1} parent=1 // pred_check
      _
    $region15: #{_lambda_.1} parent=1 // pred_check_branch
      %32 = sbr.rel (0) target = $region17
    $region16: #{_lambda_.1} parent=1 // pred_region
      %s34 = ssub.s32 8192, 8192
      %35 = vsyncadd [#allocation6], %s34
      %s36 = sshll.u32 [#allocation5], 4
      %s37 = int_to_ptr.vmem [resolvable:$true] %s36
      %42 = dma.hbm_to_vmem [thread:$0]  %s3, 8192, %s37, [#allocation6], 256, 256, 16
    $region17: #{_lambda_.1} parent=1 // pred_fallthru
      _
    // Predicated region
    $region18: #{_lambda_.1} parent=1 // pred_check
      _
    $region19: #{_lambda_.1} parent=1 // pred_check_branch
      %44 = sbr.rel (0) target = $region21
    $region20: #{_lambda_.1} parent=1 // pred_region
      _
    $region21: #{_lambda_.1} parent=1 // pred_fallthru
      _
    // Predicated region
    $region22: #{_lambda_.1} parent=1 // pred_check
      _
    $region23: #{_lambda_.1} parent=1 // pred_check_branch
      %46 = sbr.rel (0) target = $region25
    $region24: #{_lambda_.1} parent=1 // pred_region
      %s48 = ssub.s32 4096, 4096
      %49 = vsyncadd [#allocation6], %s48
      %s50 = sshll.u32 [#allocation7], 4
      %s51 = int_to_ptr.vmem [resolvable:$true] %s50
      %56 = dma.hbm_to_vmem [thread:$0]  %s5, 4096, %s51, [#allocation6], 128, 128, 8
    $region25: #{_lambda_.1} parent=1 // pred_fallthru
      _
    // Predicated region
    $region26: #{_lambda_.1} parent=1 // pred_check
      _
    $region27: #{_lambda_.1} parent=1 // pred_check_branch
      %58 = sbr.rel (0) target = $region29
    $region28: #{_lambda_.1} parent=1 // pred_region
      _
    $region29: #{_lambda_.1} parent=1 // pred_fallthru
      _
    // Predicated region
    $region30: #{_lambda_.1} parent=1 // pred_check
      _
    $region31: #{_lambda_.1} parent=1 // pred_check_branch
      %60 = sbr.rel (0) target = $region33
    $region32: #{_lambda_.1} parent=1 // pred_region
      %61 = dma.done [#allocation3], 2048
    $region33: #{_lambda_.1} parent=1 // pred_fallthru
      _
    // Predicated region
    $region34: #{_lambda_.1} parent=1 // pred_check
      _
    $region35: #{_lambda_.1} parent=1 // pred_check_branch
      %63 = sbr.rel (0) target = $region37
    $region36: #{_lambda_.1} parent=1 // pred_region
      %64 = dma.done [#allocation6], 8192
    $region37: #{_lambda_.1} parent=1 // pred_fallthru
      _
    // Predicated region
    $region38: #{_lambda_.1} parent=1 // pred_check
      _
    $region39: #{_lambda_.1} parent=1 // pred_check_branch
      %66 = sbr.rel (0) target = $region41
    $region40: #{_lambda_.1} parent=1 // pred_region
      %67 = dma.done [#allocation6], 4096
    $region41: #{_lambda_.1} parent=1 // pred_fallthru
      _
    %v68 = vld [vmem:[%s0] sm:$0x3]
    %v69 = vld [vmem:[#allocation2] sm:$0xff]
    %v70 = vld [vmem:[#allocation2 + $0x8] sm:$0xff]
    %v71 = vld [vmem:[#allocation2 + $0x10] sm:$0xff]
    %v72 = vld [vmem:[#allocation2 + $0x18] sm:$0xff]
    %v73 = vld [vmem:[#allocation2 + $0x20] sm:$0xff]
    %v74 = vld [vmem:[#allocation2 + $0x28] sm:$0xff]
    %v75 = vld [vmem:[#allocation2 + $0x30] sm:$0xff]
    %v76 = vld [vmem:[#allocation2 + $0x38] sm:$0xff]
    %v77 = vld [vmem:[#allocation2 + $0x40] sm:$0xff]
    %v78 = vld [vmem:[#allocation2 + $0x48] sm:$0xff]
    %v79 = vld [vmem:[#allocation2 + $0x50] sm:$0xff]
    %v80 = vld [vmem:[#allocation2 + $0x58] sm:$0xff]
    %v81 = vld [vmem:[#allocation2 + $0x60] sm:$0xff]
    %v82 = vld [vmem:[#allocation2 + $0x68] sm:$0xff]
    %v83 = vld [vmem:[#allocation2 + $0x70] sm:$0xff]
    %v84 = vld [vmem:[#allocation2 + $0x78] sm:$0xff]
    %v85 = vld [vmem:[%s2] sm:$0x3]
    %v87 = vlaneseq
    %v88 = vshrl.u32 %v87, 7
    %v89 = vsub.s32 0, %v88
    %v90 = vrot.slane %v85, %v89
    %v91 = vlaneseq
    %v92 = vshrl.u32 %v91, 7
    %v93 = vsub.s32 1, %v92
    %v94 = vrot.slane %v85, %v93
    %vm97 = vcmask 523264
    %v99 = vsel %vm97, %v68, 0
    %101 = vmatprep.subr.mxu0 0.0
    %102 = vmatpush1.msra.mxu0 0.0
    %103 = vmatprep.subr.mxu0 0.0
    %104 = vmatpush1.msra.mxu0 0.0
    %105 = vmatprep.subr.mxu0 0.0
    %106 = vmatpush1.msra.mxu0 0.0
    %107 = vmatprep.subr.mxu0 0.0
    %108 = vmatpush1.msra.mxu0 0.0
    %109 = vmatprep.subr.mxu0 0.0
    %110 = vmatpush1.msra.mxu0 0.0
    %111 = vmatprep.subr.mxu0 0.0
    %112 = vmatpush1.msra.mxu0 0.0
    %113 = vmatprep.subr.mxu0 0.0
    %114 = vmatpush1.msra.mxu0 0.0
    %115 = vmatprep.subr.mxu0 0.0
    %116 = vmatpush1.msra.mxu0 0.0
    %117 = vmatprep.subr.mxu0 %v84
    %118 = vmatpush1.msra.mxu0 %v83
    %119 = vmatprep.subr.mxu0 %v82
    %120 = vmatpush1.msra.mxu0 %v81
    %121 = vmatprep.subr.mxu0 %v80
    %122 = vmatpush1.msra.mxu0 %v79
    %123 = vmatprep.subr.mxu0 %v78
    %124 = vmatpush1.msra.mxu0 %v77
    %125 = vmatprep.subr.mxu0 %v76
    %126 = vmatpush1.msra.mxu0 %v75
    %127 = vmatprep.subr.mxu0 %v74
    %128 = vmatpush1.msra.mxu0 %v73
    %129 = vmatprep.subr.mxu0 %v72
    %130 = vmatpush1.msra.mxu0 %v71
    %131 = vmatprep.subr.mxu0 %v70
    %132 = vmatpush1.msra.mxu0 %v69
    %133 = vmatprep.subr.mxu0 0.0
    %134 = vmatpush2.msra.mxu0 0.0
    %135 = vmatprep.subr.mxu0 0.0
    %136 = vmatpush2.msra.mxu0 0.0
    %137 = vmatprep.subr.mxu0 0.0
    %138 = vmatpush2.msra.mxu0 0.0
    %139 = vmatprep.subr.mxu0 0.0
    %140 = vmatpush2.msra.mxu0 0.0
    %141 = vmatprep.subr.mxu0 0.0
    %142 = vmatpush2.msra.mxu0 0.0
    %143 = vmatprep.subr.mxu0 0.0
    %144 = vmatpush2.msra.mxu0 0.0
    %145 = vmatprep.subr.mxu0 0.0
    %146 = vmatpush2.msra.mxu0 0.0
    %147 = vmatprep.subr.mxu0 0.0
    %148 = vmatpush2.msra.mxu0 0.0
    %149 = vmatprep.subr.mxu0 0.0
    %150 = vmatpush2.msra.mxu0 0.0
    %151 = vmatprep.subr.mxu0 0.0
    %152 = vmatpush2.msra.mxu0 0.0
    %153 = vmatprep.subr.mxu0 0.0
    %154 = vmatpush2.msra.mxu0 0.0
    %155 = vmatprep.subr.mxu0 0.0
    %156 = vmatpush2.msra.mxu0 0.0
    %157 = vmatprep.subr.mxu0 0.0
    %158 = vmatpush2.msra.mxu0 0.0
    %159 = vmatprep.subr.mxu0 0.0
    %160 = vmatpush2.msra.mxu0 0.0
    %161 = vmatprep.subr.mxu0 0.0
    %162 = vmatpush2.msra.mxu0 0.0
    %163 = vmatprep.subr.mxu0 0.0
    %164 = vmatpush2.msra.mxu0 0.0
    %165 = vmatprep.mubr.f32.mxu0 0.0
    %166 = vmatmul.mubr.f32.gmra.mxu0 %v99
    %v167 = vpop.f32.mrf.mxu0
    %v168 = vadd.f32 %v90, %v167
    %v169 = vpop.f32.mrf.mxu0
    %v170 = vadd.f32 %v94, %v169
    %171 = vdwg.mxu0
    %v172 = vmax.f32 %v168, 0.0
    %v173 = vmax.f32 %v170, 0.0
    %174 = vrot.lane.b32.xlu0 %v172, 127
    %v175 = vpop.permute.xlu0 %174
    %176 = vrot.lane.b32.xlu0 %v173, 127
    %v177 = vpop.permute.xlu0 %176
    %v178 = vlaneseq
    %v179 = vand.u32 %v178, 127
    %vm180 = vcmp.lt.s32.totalorder %v179, 127
    %v181 = vsel %vm180, %v175, %v177
    %v182 = vsel %vm180, %v177, %v175
    %v183 = vmax.f32 %v172, %v181
    %v184 = vmax.f32 %v173, %v182
    %v185 = vld [vmem:[#allocation5] sm:$0xff]
    %v186 = vld [vmem:[#allocation5 + $0x8] sm:$0xff]
    %v187 = vld [vmem:[#allocation5 + $0x10] sm:$0xff]
    %v188 = vld [vmem:[#allocation5 + $0x18] sm:$0xff]
    %v189 = vld [vmem:[#allocation5 + $0x20] sm:$0xff]
    %v190 = vld [vmem:[#allocation5 + $0x28] sm:$0xff]
    %v191 = vld [vmem:[#allocation5 + $0x30] sm:$0xff]
    %v192 = vld [vmem:[#allocation5 + $0x38] sm:$0xff]
    %v193 = vld [vmem:[#allocation5 + $0x40] sm:$0xff]
    %v194 = vld [vmem:[#allocation5 + $0x48] sm:$0xff]
    %v195 = vld [vmem:[#allocation5 + $0x50] sm:$0xff]
    %v196 = vld [vmem:[#allocation5 + $0x58] sm:$0xff]
    %v197 = vld [vmem:[#allocation5 + $0x60] sm:$0xff]
    %v198 = vld [vmem:[#allocation5 + $0x68] sm:$0xff]
    %v199 = vld [vmem:[#allocation5 + $0x70] sm:$0xff]
    %v200 = vld [vmem:[#allocation5 + $0x78] sm:$0xff]
    %v201 = vld [vmem:[#allocation5 + $0x80] sm:$0xff]
    %v202 = vld [vmem:[#allocation5 + $0x88] sm:$0xff]
    %v203 = vld [vmem:[#allocation5 + $0x90] sm:$0xff]
    %v204 = vld [vmem:[#allocation5 + $0x98] sm:$0xff]
    %v205 = vld [vmem:[#allocation5 + $0xa0] sm:$0xff]
    %v206 = vld [vmem:[#allocation5 + $0xa8] sm:$0xff]
    %v207 = vld [vmem:[#allocation5 + $0xb0] sm:$0xff]
    %v208 = vld [vmem:[#allocation5 + $0xb8] sm:$0xff]
    %v209 = vld [vmem:[#allocation5 + $0xc0] sm:$0xff]
    %v210 = vld [vmem:[#allocation5 + $0xc8] sm:$0xff]
    %v211 = vld [vmem:[#allocation5 + $0xd0] sm:$0xff]
    %v212 = vld [vmem:[#allocation5 + $0xd8] sm:$0xff]
    %v213 = vld [vmem:[#allocation5 + $0xe0] sm:$0xff]
    %v214 = vld [vmem:[#allocation5 + $0xe8] sm:$0xff]
    %v215 = vld [vmem:[#allocation5 + $0xf0] sm:$0xff]
    %v216 = vld [vmem:[#allocation5 + $0xf8] sm:$0xff]
    %v217 = vld [vmem:[#allocation5 + $0x100] sm:$0xff]
    %v218 = vld [vmem:[#allocation5 + $0x108] sm:$0xff]
    %v219 = vld [vmem:[#allocation5 + $0x110] sm:$0xff]
    %v220 = vld [vmem:[#allocation5 + $0x118] sm:$0xff]
    %v221 = vld [vmem:[#allocation5 + $0x120] sm:$0xff]
    %v222 = vld [vmem:[#allocation5 + $0x128] sm:$0xff]
    %v223 = vld [vmem:[#allocation5 + $0x130] sm:$0xff]
    %v224 = vld [vmem:[#allocation5 + $0x138] sm:$0xff]
    %v225 = vld [vmem:[#allocation5 + $0x140] sm:$0xff]
    %v226 = vld [vmem:[#allocation5 + $0x148] sm:$0xff]
    %v227 = vld [vmem:[#allocation5 + $0x150] sm:$0xff]
    %v228 = vld [vmem:[#allocation5 + $0x158] sm:$0xff]
    %v229 = vld [vmem:[#allocation5 + $0x160] sm:$0xff]
    %v230 = vld [vmem:[#allocation5 + $0x168] sm:$0xff]
    %v231 = vld [vmem:[#allocation5 + $0x170] sm:$0xff]
    %v232 = vld [vmem:[#allocation5 + $0x178] sm:$0xff]
    %v233 = vld [vmem:[#allocation5 + $0x180] sm:$0xff]
    %v234 = vld [vmem:[#allocation5 + $0x188] sm:$0xff]
    %v235 = vld [vmem:[#allocation5 + $0x190] sm:$0xff]
    %v236 = vld [vmem:[#allocation5 + $0x198] sm:$0xff]
    %v237 = vld [vmem:[#allocation5 + $0x1a0] sm:$0xff]
    %v238 = vld [vmem:[#allocation5 + $0x1a8] sm:$0xff]
    %v239 = vld [vmem:[#allocation5 + $0x1b0] sm:$0xff]
    %v240 = vld [vmem:[#allocation5 + $0x1b8] sm:$0xff]
    %v241 = vld [vmem:[#allocation5 + $0x1c0] sm:$0xff]
    %v242 = vld [vmem:[#allocation5 + $0x1c8] sm:$0xff]
    %v243 = vld [vmem:[#allocation5 + $0x1d0] sm:$0xff]
    %v244 = vld [vmem:[#allocation5 + $0x1d8] sm:$0xff]
    %v245 = vld [vmem:[#allocation5 + $0x1e0] sm:$0xff]
    %v246 = vld [vmem:[#allocation5 + $0x1e8] sm:$0xff]
    %v247 = vld [vmem:[#allocation5 + $0x1f0] sm:$0xff]
    %v248 = vld [vmem:[#allocation5 + $0x1f8] sm:$0xff]
    %v249 = vld [vmem:[%s4] sm:$0x3]
    %v251 = vlaneseq
    %v252 = vshrl.u32 %v251, 7
    %v253 = vsub.s32 0, %v252
    %v254 = vrot.slane %v249, %v253
    %v255 = vlaneseq
    %v256 = vshrl.u32 %v255, 7
    %v257 = vsub.s32 1, %v256
    %v258 = vrot.slane %v249, %v257
    %261 = vmatprep.subr.mxu0 %v216
    %262 = vmatpush1.msra.mxu0 %v215
    %263 = vmatprep.subr.mxu0 %v214
    %264 = vmatpush1.msra.mxu0 %v213
    %265 = vmatprep.subr.mxu0 %v212
    %266 = vmatpush1.msra.mxu0 %v211
    %267 = vmatprep.subr.mxu0 %v210
    %268 = vmatpush1.msra.mxu0 %v209
    %269 = vmatprep.subr.mxu0 %v208
    %270 = vmatpush1.msra.mxu0 %v207
    %271 = vmatprep.subr.mxu0 %v206
    %272 = vmatpush1.msra.mxu0 %v205
    %273 = vmatprep.subr.mxu0 %v204
    %274 = vmatpush1.msra.mxu0 %v203
    %275 = vmatprep.subr.mxu0 %v202
    %276 = vmatpush1.msra.mxu0 %v201
    %277 = vmatprep.subr.mxu0 %v200
    %278 = vmatpush1.msra.mxu0 %v199
    %279 = vmatprep.subr.mxu0 %v198
    %280 = vmatpush1.msra.mxu0 %v197
    %281 = vmatprep.subr.mxu0 %v196
    %282 = vmatpush1.msra.mxu0 %v195
    %283 = vmatprep.subr.mxu0 %v194
    %284 = vmatpush1.msra.mxu0 %v193
    %285 = vmatprep.subr.mxu0 %v192
    %286 = vmatpush1.msra.mxu0 %v191
    %287 = vmatprep.subr.mxu0 %v190
    %288 = vmatpush1.msra.mxu0 %v189
    %289 = vmatprep.subr.mxu0 %v188
    %290 = vmatpush1.msra.mxu0 %v187
    %291 = vmatprep.subr.mxu0 %v186
    %292 = vmatpush1.msra.mxu0 %v185
    %293 = vmatprep.subr.mxu0 %v248
    %294 = vmatpush2.msra.mxu0 %v247
    %295 = vmatprep.subr.mxu0 %v246
    %296 = vmatpush2.msra.mxu0 %v245
    %297 = vmatprep.subr.mxu0 %v244
    %298 = vmatpush2.msra.mxu0 %v243
    %299 = vmatprep.subr.mxu0 %v242
    %300 = vmatpush2.msra.mxu0 %v241
    %301 = vmatprep.subr.mxu0 %v240
    %302 = vmatpush2.msra.mxu0 %v239
    %303 = vmatprep.subr.mxu0 %v238
    %304 = vmatpush2.msra.mxu0 %v237
    %305 = vmatprep.subr.mxu0 %v236
    %306 = vmatpush2.msra.mxu0 %v235
    %307 = vmatprep.subr.mxu0 %v234
    %308 = vmatpush2.msra.mxu0 %v233
    %309 = vmatprep.subr.mxu0 %v232
    %310 = vmatpush2.msra.mxu0 %v231
    %311 = vmatprep.subr.mxu0 %v230
    %312 = vmatpush2.msra.mxu0 %v229
    %313 = vmatprep.subr.mxu0 %v228
    %314 = vmatpush2.msra.mxu0 %v227
    %315 = vmatprep.subr.mxu0 %v226
    %316 = vmatpush2.msra.mxu0 %v225
    %317 = vmatprep.subr.mxu0 %v224
    %318 = vmatpush2.msra.mxu0 %v223
    %319 = vmatprep.subr.mxu0 %v222
    %320 = vmatpush2.msra.mxu0 %v221
    %321 = vmatprep.subr.mxu0 %v220
    %322 = vmatpush2.msra.mxu0 %v219
    %323 = vmatprep.subr.mxu0 %v218
    %324 = vmatpush2.msra.mxu0 %v217
    %325 = vmatprep.mubr.f32.mxu0 %v184
    %326 = vmatmul.mubr.f32.gmra.mxu0 %v183
    %v327 = vpop.f32.mrf.mxu0
    %v328 = vadd.f32 %v254, %v327
    %v329 = vpop.f32.mrf.mxu0
    %v330 = vadd.f32 %v258, %v329
    %331 = vdwg.mxu0
    %v332 = vmax.f32 %v328, 0.0
    %v333 = vmax.f32 %v330, 0.0
    %334 = vrot.lane.b32.xlu0 %v332, 127
    %v335 = vpop.permute.xlu0 %334
    %336 = vrot.lane.b32.xlu0 %v333, 127
    %v337 = vpop.permute.xlu0 %336
    %v338 = vsel %vm180, %v335, %v337
    %v339 = vsel %vm180, %v337, %v335
    %v340 = vmax.f32 %v332, %v338
    %v341 = vmax.f32 %v333, %v339
    %v342 = vld [vmem:[#allocation7] sm:$0xff]
    %v343 = vld [vmem:[#allocation7 + $0x8] sm:$0xff]
    %v344 = vld [vmem:[#allocation7 + $0x10] sm:$0xff]
    %v345 = vld [vmem:[#allocation7 + $0x18] sm:$0xff]
    %v346 = vld [vmem:[#allocation7 + $0x20] sm:$0xff]
    %v347 = vld [vmem:[#allocation7 + $0x28] sm:$0xff]
    %v348 = vld [vmem:[#allocation7 + $0x30] sm:$0xff]
    %v349 = vld [vmem:[#allocation7 + $0x38] sm:$0xff]
    %v350 = vld [vmem:[#allocation7 + $0x40] sm:$0xff]
    %v351 = vld [vmem:[#allocation7 + $0x48] sm:$0xff]
    %v352 = vld [vmem:[#allocation7 + $0x50] sm:$0xff]
    %v353 = vld [vmem:[#allocation7 + $0x58] sm:$0xff]
    %v354 = vld [vmem:[#allocation7 + $0x60] sm:$0xff]
    %v355 = vld [vmem:[#allocation7 + $0x68] sm:$0xff]
    %v356 = vld [vmem:[#allocation7 + $0x70] sm:$0xff]
    %v357 = vld [vmem:[#allocation7 + $0x78] sm:$0xff]
    %v358 = vld [vmem:[#allocation7 + $0x80] sm:$0xff]
    %v359 = vld [vmem:[#allocation7 + $0x88] sm:$0xff]
    %v360 = vld [vmem:[#allocation7 + $0x90] sm:$0xff]
    %v361 = vld [vmem:[#allocation7 + $0x98] sm:$0xff]
    %v362 = vld [vmem:[#allocation7 + $0xa0] sm:$0xff]
    %v363 = vld [vmem:[#allocation7 + $0xa8] sm:$0xff]
    %v364 = vld [vmem:[#allocation7 + $0xb0] sm:$0xff]
    %v365 = vld [vmem:[#allocation7 + $0xb8] sm:$0xff]
    %v366 = vld [vmem:[#allocation7 + $0xc0] sm:$0xff]
    %v367 = vld [vmem:[#allocation7 + $0xc8] sm:$0xff]
    %v368 = vld [vmem:[#allocation7 + $0xd0] sm:$0xff]
    %v369 = vld [vmem:[#allocation7 + $0xd8] sm:$0xff]
    %v370 = vld [vmem:[#allocation7 + $0xe0] sm:$0xff]
    %v371 = vld [vmem:[#allocation7 + $0xe8] sm:$0xff]
    %v372 = vld [vmem:[#allocation7 + $0xf0] sm:$0xff]
    %v373 = vld [vmem:[#allocation7 + $0xf8] sm:$0xff]
    %v374 = vld [vmem:[%s6] sm:$0x1]
    %v376 = vlaneseq
    %v377 = vshrl.u32 %v376, 7
    %v378 = vsub.s32 0, %v377
    %v379 = vrot.slane %v374, %v378
    %381 = vmatprep.subr.mxu0 0.0
    %382 = vmatpush1.msra.mxu0 %v357
    %383 = vmatprep.subr.mxu0 0.0
    %384 = vmatpush1.msra.mxu0 %v356
    %385 = vmatprep.subr.mxu0 0.0
    %386 = vmatpush1.msra.mxu0 %v355
    %387 = vmatprep.subr.mxu0 0.0
    %388 = vmatpush1.msra.mxu0 %v354
    %389 = vmatprep.subr.mxu0 0.0
    %390 = vmatpush1.msra.mxu0 %v353
    %391 = vmatprep.subr.mxu0 0.0
    %392 = vmatpush1.msra.mxu0 %v352
    %393 = vmatprep.subr.mxu0 0.0
    %394 = vmatpush1.msra.mxu0 %v351
    %395 = vmatprep.subr.mxu0 0.0
    %396 = vmatpush1.msra.mxu0 %v350
    %397 = vmatprep.subr.mxu0 0.0
    %398 = vmatpush1.msra.mxu0 %v349
    %399 = vmatprep.subr.mxu0 0.0
    %400 = vmatpush1.msra.mxu0 %v348
    %401 = vmatprep.subr.mxu0 0.0
    %402 = vmatpush1.msra.mxu0 %v347
    %403 = vmatprep.subr.mxu0 0.0
    %404 = vmatpush1.msra.mxu0 %v346
    %405 = vmatprep.subr.mxu0 0.0
    %406 = vmatpush1.msra.mxu0 %v345
    %407 = vmatprep.subr.mxu0 0.0
    %408 = vmatpush1.msra.mxu0 %v344
    %409 = vmatprep.subr.mxu0 0.0
    %410 = vmatpush1.msra.mxu0 %v343
    %411 = vmatprep.subr.mxu0 0.0
    %412 = vmatpush1.msra.mxu0 %v342
    %413 = vmatprep.subr.mxu0 0.0
    %414 = vmatpush2.msra.mxu0 %v373
    %415 = vmatprep.subr.mxu0 0.0
    %416 = vmatpush2.msra.mxu0 %v372
    %417 = vmatprep.subr.mxu0 0.0
    %418 = vmatpush2.msra.mxu0 %v371
    %419 = vmatprep.subr.mxu0 0.0
    %420 = vmatpush2.msra.mxu0 %v370
    %421 = vmatprep.subr.mxu0 0.0
    %422 = vmatpush2.msra.mxu0 %v369
    %423 = vmatprep.subr.mxu0 0.0
    %424 = vmatpush2.msra.mxu0 %v368
    %425 = vmatprep.subr.mxu0 0.0
    %426 = vmatpush2.msra.mxu0 %v367
    %427 = vmatprep.subr.mxu0 0.0
    %428 = vmatpush2.msra.mxu0 %v366
    %429 = vmatprep.subr.mxu0 0.0
    %430 = vmatpush2.msra.mxu0 %v365
    %431 = vmatprep.subr.mxu0 0.0
    %432 = vmatpush2.msra.mxu0 %v364
    %433 = vmatprep.subr.mxu0 0.0
    %434 = vmatpush2.msra.mxu0 %v363
    %435 = vmatprep.subr.mxu0 0.0
    %436 = vmatpush2.msra.mxu0 %v362
    %437 = vmatprep.subr.mxu0 0.0
    %438 = vmatpush2.msra.mxu0 %v361
    %439 = vmatprep.subr.mxu0 0.0
    %440 = vmatpush2.msra.mxu0 %v360
    %441 = vmatprep.subr.mxu0 0.0
    %442 = vmatpush2.msra.mxu0 %v359
    %443 = vmatprep.subr.mxu0 0.0
    %444 = vmatpush2.msra.mxu0 %v358
    %445 = vmatprep.mubr.f32.mxu0 %v341
    %446 = vmatmul.mubr.f32.gmra.mxu0 %v340
    %v447 = vpop.f32.mrf.mxu0
    %v448 = vadd.f32 %v379, %v447
    %v449 = vpop.f32.mrf.mxu0
    %450 = vdwg.mxu0
    %451 = vst [vmem:[#allocation8] sm:$0x3] %v448
    // Predicated region
    $region42: #{_lambda_.1} parent=1 // pred_check
      _
    $region43: #{_lambda_.1} parent=1 // pred_check_branch
      %453 = sbr.rel (0) target = $region45
    $region44: #{_lambda_.1} parent=1 // pred_region
      %s455 = ssub.s32 32, 32
      %456 = vsyncadd [#allocation4], %s455
      %s458 = sshll.u32 [#allocation8], 4
      %s459 = int_to_ptr.vmem [resolvable:$true] %s458
      %461 = dma.vmem_to_hbm [thread:$0]  %s459, 32, %s7, [#allocation4]
    $region45: #{_lambda_.1} parent=1 // pred_fallthru
      _
    // Predicated region
    $region46: #{_lambda_.1} parent=1 // pred_check
      _
    $region47: #{_lambda_.1} parent=1 // pred_check_branch
      %463 = sbr.rel (0) target = $region49
    $region48: #{_lambda_.1} parent=1 // pred_region
      %464 = dma.done [#allocation4], 32
    $region49: #{_lambda_.1} parent=1 // pred_fallthru
      _
    %465 = vsyncpa [#allocation3], 1
    %466 = vsyncpa [#allocation6], 1
    %467 = vsyncpa [#allocation4], 1

</llo_original>
